<compile_context>
chip_gen: v7x
topology: tpu7x:2x2x1
jax: 0.10.0
libtpu: 0.0.40
codegen_flags: <defaults>
</compile_context>

<pallas_src>
import functools

import jax
import jax.numpy as jnp
from jax.experimental import pallas as pl
from jax.experimental.pallas import tpu as pltpu

LANE = 128      # vreg lane width / MXU feed alignment
SUBLANE = 8     # f32 sublane alignment


def _round_up(n, m):
    return (n + m - 1) // m * m


# ----------------------------------------------------------------------------- kernel
def autoencoder_kernel(x_ref, w_enc_ref, b_enc_ref, w_dec_ref, b_dec_ref, out_ref):
    """One (TB, Dp) batch tile.

    Weights arrive pre-transposed to (in, out), so both matmuls are plain
    (M, K) x (K, N) MXU ops with f32 accumulation.
    """
    cdt = w_enc_ref.dtype                                   # MXU operand dtype (f32 or bf16)
    x = x_ref[...].astype(cdt)

    # Encoder: (TB, Dp) @ (Dp, Hp) -> (TB, Hp)
    h = jnp.dot(x, w_enc_ref[...], preferred_element_type=jnp.float32)
    h = jnp.tanh(h + b_enc_ref[...])                        # bias/activation in f32

    # Decoder: (TB, Hp) @ (Hp, Dp) -> (TB, Dp)
    y = jnp.dot(h.astype(cdt), w_dec_ref[...], preferred_element_type=jnp.float32)
    z = y + b_dec_ref[...]

    # sigmoid(z) == 0.5 * tanh(0.5 * z) + 0.5  -> single EUP op + cheap VPU ops.
    out_ref[...] = (0.5 * jnp.tanh(0.5 * z) + 0.5).astype(out_ref.dtype)


# ------------------------------------------------------------------ one-time param prep
def init_autoencoder_params(w_enc, b_enc, w_dec, b_dec, *, compute_dtype=jnp.float32):
    """Pad + pack parameters ONCE at model-init time (not in the per-call hot path).

    w_enc: (H, D), b_enc: (H,)   -- PyTorch nn.Linear(input_size, hidden_size) layout.
    w_dec: (D, H), b_dec: (D,)   -- PyTorch nn.Linear(hidden_size, input_size) layout.

    Returns weights pre-transposed to (in, out) and zero-padded to the 128-lane width.
    compute_dtype=jnp.bfloat16 enables the faster MXU path for large D/H (loosens the
    1e-5 match); default f32 is exact to the reference within tolerance.
    """
    H, D = w_enc.shape
    assert w_dec.shape == (D, H) and b_enc.shape == (H,) and b_dec.shape == (D,)
    Dp, Hp = _round_up(D, LANE), _round_up(H, LANE)

    w_enc_t = jnp.zeros((Dp, Hp), compute_dtype).at[:D, :H].set(w_enc.T.astype(compute_dtype))
    w_dec_t = jnp.zeros((Hp, Dp), compute_dtype).at[:H, :D].set(w_dec.T.astype(compute_dtype))
    b_enc_p = jnp.zeros((1, Hp), jnp.float32).at[0, :H].set(b_enc.astype(jnp.float32))
    b_dec_p = jnp.zeros((1, Dp), jnp.float32).at[0, :D].set(b_dec.astype(jnp.float32))

    params = (w_enc_t, b_enc_p, w_dec_t, b_dec_p)
    return jax.tree_util.tree_map(jax.block_until_ready, params)


# ------------------------------------------------------------------------ tile sizing
def _vmem_budget_bytes():
    # Physical VMEM: 128 MiB (v5e/v6e), 64 MiB per TensorCore (v7x).  Leave headroom
    # for compiler-internal scratch; conservative fallback if the query is unavailable.
    cap = 64 << 20
    try:
        info = pltpu.get_tpu_info()
        cap = int(getattr(info, "vmem_capacity_bytes", cap))
    except Exception:  # off-TPU tracing / older runtimes
        pass
    return int(cap * 0.7)


def _select_batch_tile(B, Dp, Hp, x_itemsize, w_itemsize, budget):
    """Biggest batch tile that fits the VMEM budget, balanced across grid steps."""
    Bs = _round_up(B, SUBLANE)
    # Single-buffered (pl.Buffered(1)) grid-invariant operands: both weights + biases.
    fixed = 2 * Dp * Hp * w_itemsize + (Hp + Dp) * 4
    # Per batch row: x + out double-buffered, plus the f32 (TB, Hp) hidden intermediate.
    per_row = 2 * Dp * x_itemsize * 2 + Hp * 4
    # NOTE: if `fixed` alone exceeds the budget, a contraction-axis grid would be needed.
    tb_cap = max(SUBLANE, (budget - fixed) // per_row // SUBLANE * SUBLANE)
    tb_cap = min(tb_cap, 1024)  # per-grid-step overhead ~0.35us; >1024 rows gains nothing

    num_tiles = pl.cdiv(Bs, tb_cap)
    if Bs >= 2 * SUBLANE:
        num_tiles = max(num_tiles, 2)       # let v7x's two TensorCores both get work
    TB = _round_up(pl.cdiv(Bs, num_tiles), SUBLANE)
    num_tiles = pl.cdiv(Bs, TB)             # rebalance after sublane rounding
    return TB, num_tiles


# ------------------------------------------------------------------------ forward pass
@jax.jit
def custom_autoencoder(x, params):
    """x: (B, D) float32; params from init_autoencoder_params."""
    w_enc_t, b_enc_p, w_dec_t, b_dec_p = params
    B, D = x.shape
    Dp, Hp = w_enc_t.shape

    budget = _vmem_budget_bytes()
    TB, num_tiles = _select_batch_tile(
        B, Dp, Hp, x.dtype.itemsize, w_enc_t.dtype.itemsize, budget)
    Bp = TB * num_tiles

    # Only the activation is padded per call (exact: padded rows/cols are sliced off).
    x_p = jnp.zeros((Bp, Dp), x.dtype).at[:B, :D].set(x)

    invariant_spec = functools.partial(pl.BlockSpec, pipeline_mode=pl.Buffered(1))

    out_p = pl.pallas_call(
        autoencoder_kernel,
        out_shape=jax.ShapeDtypeStruct((Bp, Dp), x.dtype),
        grid=(num_tiles,),
        in_specs=[
            pl.BlockSpec((TB, Dp), lambda i: (i, 0)),        # x: tiled over batch
            invariant_spec((Dp, Hp), lambda i: (0, 0)),      # encoder weight (in, out)
            invariant_spec((1, Hp), lambda i: (0, 0)),       # encoder bias
            invariant_spec((Hp, Dp), lambda i: (0, 0)),      # decoder weight (in, out)
            invariant_spec((1, Dp), lambda i: (0, 0)),       # decoder bias
        ],
        out_specs=pl.BlockSpec((TB, Dp), lambda i: (i, 0)),  # lane-dense output tile
        compiler_params=pltpu.CompilerParams(
            dimension_semantics=("parallel",),               # shard batch tiles across TCs
            vmem_limit_bytes=budget,
        ),
    )(x_p, w_enc_t, b_enc_p, w_dec_t, b_dec_p)

    return out_p[:B, :D]


def reference(x, w_enc, b_enc, w_dec, b_dec):
    h = jnp.tanh(x @ w_enc.T + b_enc)
    return jax.nn.sigmoid(h @ w_dec.T + b_dec)


if __name__ == "__main__":
    # Small shapes consistent with the module: batch=8, input_size=16, hidden_size=100.
    B, D, H = 8, 16, 100

    key = jax.random.PRNGKey(0)
    kx, k1, k2, k3, k4 = jax.random.split(key, 5)

    x = jax.random.normal(kx, (B, D), dtype=jnp.float32)

    # Deterministic "Linear" parameters (PyTorch layout: weight = (out, in)).
    bound_enc = 1.0 / jnp.sqrt(D)
    w_enc = jax.random.uniform(k1, (H, D), minval=-bound_enc, maxval=bound_enc, dtype=jnp.float32)
    b_enc = jax.random.uniform(k2, (H,), minval=-bound_enc, maxval=bound_enc, dtype=jnp.float32)

    bound_dec = 1.0 / jnp.sqrt(H)
    w_dec = jax.random.uniform(k3, (D, H), minval=-bound_dec, maxval=bound_dec, dtype=jnp.float32)
    b_dec = jax.random.uniform(k4, (D,), minval=-bound_dec, maxval=bound_dec, dtype=jnp.float32)

    # One-time parameter packing (init-time cost, outside the per-call hot path).
    params = init_autoencoder_params(w_enc, b_enc, w_dec, b_dec)

    out = custom_autoencoder(x, params)
    out = jax.block_until_ready(out)

    ref = reference(x, w_enc, b_enc, w_dec, b_dec)
    assert out.shape == (B, D), out.shape
    assert jnp.allclose(out, ref, atol=1e-5, rtol=1e-5), float(jnp.max(jnp.abs(out - ref)))

    print("KERNEL_OK")
</pallas_src>

<mosaic_0001>
module attributes {stable_mosaic.version = 11 : i64} {
  func.func @autoencoder_kernel(%arg0: i32, %arg1: memref<8x128xf32, #tpu.memory_space<vmem>>, %arg2: memref<128x128xf32, #tpu.memory_space<vmem>>, %arg3: memref<1x128xf32, #tpu.memory_space<vmem>>, %arg4: memref<128x128xf32, #tpu.memory_space<vmem>>, %arg5: memref<1x128xf32, #tpu.memory_space<vmem>>, %arg6: memref<8x128xf32, #tpu.memory_space<vmem>>) attributes {dimension_semantics = [#tpu.dimension_semantics<parallel>], iteration_bounds = array<i64: 1>, scalar_prefetch = 0 : i64, scratch_operands = 0 : i64, tpu.core_type = #tpu.core_type<tc>, window_params = [{transform_indices = @transform_0, window_bounds = array<i64: 8, 128>}, {pipeline_mode = #tpu.pipeline_mode<synchronous>, transform_indices = @transform_1, window_bounds = array<i64: 128, 128>}, {pipeline_mode = #tpu.pipeline_mode<synchronous>, transform_indices = @transform_2, window_bounds = array<i64: 1, 128>}, {pipeline_mode = #tpu.pipeline_mode<synchronous>, transform_indices = @transform_3, window_bounds = array<i64: 128, 128>}, {pipeline_mode = #tpu.pipeline_mode<synchronous>, transform_indices = @transform_4, window_bounds = array<i64: 1, 128>}, {transform_indices = @transform_5, window_bounds = array<i64: 8, 128>}]} {
    %c0 = arith.constant 0 : index
    %c0_0 = arith.constant 0 : index
    %0 = vector.load %arg1[%c0, %c0_0] : memref<8x128xf32, #tpu.memory_space<vmem>>, vector<8x128xf32>
    %c0_1 = arith.constant 0 : index
    %c0_2 = arith.constant 0 : index
    %1 = vector.load %arg2[%c0_1, %c0_2] : memref<128x128xf32, #tpu.memory_space<vmem>>, vector<128x128xf32>
    %cst = arith.constant dense<0.000000e+00> : vector<8x128xf32>
    %2 = tpu.matmul %0, %1, %cst {dimension_numbers = #tpu.dot_dimension_numbers<[1], [0], [0], [1], [0, 0, 1, 1], [], []>} : vector<8x128xf32>, vector<128x128xf32>, vector<8x128xf32> -> vector<8x128xf32>
    %c0_3 = arith.constant 0 : index
    %c0_4 = arith.constant 0 : index
    %3 = vector.load %arg3[%c0_3, %c0_4] : memref<1x128xf32, #tpu.memory_space<vmem>>, vector<1x128xf32>
    %4 = vector.broadcast %3 : vector<1x128xf32> to vector<8x128xf32>
    %5 = arith.addf %2, %4 : vector<8x128xf32>
    %6 = math.tanh %5 : vector<8x128xf32>
    %c0_5 = arith.constant 0 : index
    %c0_6 = arith.constant 0 : index
    %7 = vector.load %arg4[%c0_5, %c0_6] : memref<128x128xf32, #tpu.memory_space<vmem>>, vector<128x128xf32>
    %cst_7 = arith.constant dense<0.000000e+00> : vector<8x128xf32>
    %8 = tpu.matmul %6, %7, %cst_7 {dimension_numbers = #tpu.dot_dimension_numbers<[1], [0], [0], [1], [0, 0, 1, 1], [], []>} : vector<8x128xf32>, vector<128x128xf32>, vector<8x128xf32> -> vector<8x128xf32>
    %c0_8 = arith.constant 0 : index
    %c0_9 = arith.constant 0 : index
    %9 = vector.load %arg5[%c0_8, %c0_9] : memref<1x128xf32, #tpu.memory_space<vmem>>, vector<1x128xf32>
    %10 = vector.broadcast %9 : vector<1x128xf32> to vector<8x128xf32>
    %11 = arith.addf %8, %10 : vector<8x128xf32>
    %cst_10 = arith.constant 5.000000e-01 : f32
    %12 = vector.broadcast %cst_10 : f32 to vector<8x128xf32>
    %13 = arith.mulf %12, %11 : vector<8x128xf32>
    %14 = math.tanh %13 : vector<8x128xf32>
    %cst_11 = arith.constant 5.000000e-01 : f32
    %15 = vector.broadcast %cst_11 : f32 to vector<8x128xf32>
    %16 = arith.mulf %15, %14 : vector<8x128xf32>
    %cst_12 = arith.constant 5.000000e-01 : f32
    %17 = vector.broadcast %cst_12 : f32 to vector<8x128xf32>
    %18 = arith.addf %16, %17 : vector<8x128xf32>
    %c0_13 = arith.constant 0 : index
    %c0_14 = arith.constant 0 : index
    %19 = vector.load %arg6[%c0_13, %c0_14] : memref<8x128xf32, #tpu.memory_space<vmem>>, vector<8x128xf32>
    tpu.vector_store %arg6[%c0_13, %c0_14], %18 {strides = array<i32>} : memref<8x128xf32, #tpu.memory_space<vmem>>, vector<8x128xf32>,
    return
  }
  func.func @transform_0(%arg0: i32) -> (i32, i32) {
    %c0_i32 = arith.constant 0 : i32
    %c0_i32_0 = arith.constant 0 : i32
    return %arg0, %c0_i32 : i32, i32
  }
  func.func @transform_1(%arg0: i32) -> (i32, i32) {
    %c0_i32 = arith.constant 0 : i32
    %c0_i32_0 = arith.constant 0 : i32
    %c0_i32_1 = arith.constant 0 : i32
    return %c0_i32, %c0_i32_0 : i32, i32
  }
  func.func @transform_2(%arg0: i32) -> (i32, i32) {
    %c0_i32 = arith.constant 0 : i32
    %c0_i32_0 = arith.constant 0 : i32
    %c0_i32_1 = arith.constant 0 : i32
    return %c0_i32, %c0_i32_0 : i32, i32
  }
  func.func @transform_3(%arg0: i32) -> (i32, i32) {
    %c0_i32 = arith.constant 0 : i32
    %c0_i32_0 = arith.constant 0 : i32
    %c0_i32_1 = arith.constant 0 : i32
    return %c0_i32, %c0_i32_0 : i32, i32
  }
  func.func @transform_4(%arg0: i32) -> (i32, i32) {
    %c0_i32 = arith.constant 0 : i32
    %c0_i32_0 = arith.constant 0 : i32
    %c0_i32_1 = arith.constant 0 : i32
    return %c0_i32, %c0_i32_0 : i32, i32
  }
  func.func @transform_5(%arg0: i32) -> (i32, i32) {
    %c0_i32 = arith.constant 0 : i32
    %c0_i32_0 = arith.constant 0 : i32
    return %arg0, %c0_i32 : i32, i32
  }
}

</mosaic_0001>

<llo_original>
// kernel: custom_autoencoder.1
$region0: #{custom_autoencoder.1}
  #allocation0 [shape = 'u32[]', space=smem, size = 0x4, offset = 0x4, fixed_abs, tag = 'smem constant byte address 0x4 - core index']
  #allocation1 [shape = 'u32[144,128]{1,0:T(1,128)}', space=vmem, size = 0x12000, scoped, tag = 'internal scratch']
  %s0 = inlined_call_operand.vmem [shape: f32[8,128], index: 0, kind: input, shape index: {}]
  %s1 = inlined_call_operand.hbm [shape: f32[128,128], index: 1, kind: input, shape index: {}]
  %s2 = inlined_call_operand.vmem [shape: f32[1,128], index: 2, kind: input, shape index: {}]
  %s3 = inlined_call_operand.hbm [shape: f32[128,128], index: 3, kind: input, shape index: {}]
  %s4 = inlined_call_operand.vmem [shape: f32[1,128], index: 4, kind: input, shape index: {}]
  %s5 = inlined_call_operand.hbm [shape: f32[8,128], index: 5, kind: output, shape index: {}]
  %s6 = sld [smem:[#allocation0]]
  $region38: #{custom_autoencoder.1} parent=0
    _
  %s8 = ssub.s32 1, %s6
  %s9 = scalar_select 0, %s8, %s6
  $region1: #{custom_autoencoder.1} parent=0
    #allocation2 [shape = 'u8[65536]{0}', space=vmem, size = 0x10000, scoped, tag = 'input window, operand 1, single buffered']
    #allocation3 [shape = 's32[1]{0}', space=sflag, size = 0x4, scoped, tag = 'scoped memory for custom_autoencoder.1']
    #allocation4 [shape = 's32[1]{0}', space=sflag, size = 0x4, scoped, tag = 'scoped memory for custom_autoencoder.1']
    #allocation5 [shape = 'u8[65536]{0}', space=vmem, size = 0x10000, scoped, tag = 'input window, operand 3, single buffered']
    #allocation6 [shape = 's32[1]{0}', space=sflag, size = 0x4, scoped, tag = 'scoped memory for custom_autoencoder.1']
    #allocation7 [shape = 'u8[4096]{0}', space=vmem, size = 0x1000, scoped, tag = 'output window, operand 0, single buffered']
    %10 = vsyncpa [#allocation3], 0
    %11 = vsyncpa [#allocation6], 0
    %12 = vsyncpa [#allocation4], 0
    // Predicated region
    $region2: #{custom_autoencoder.1} parent=1 // pred_check
      _
    $region3: #{custom_autoencoder.1} parent=1 // pred_check_branch
      %14 = sbr.rel (0) target = $region5
    $region4: #{custom_autoencoder.1} parent=1 // pred_region
      _
    $region5: #{custom_autoencoder.1} parent=1 // pred_fallthru
      _
    // Predicated region
    $region6: #{custom_autoencoder.1} parent=1 // pred_check
      _
    $region7: #{custom_autoencoder.1} parent=1 // pred_check_branch
      %16 = sbr.rel (0) target = $region9
    $region8: #{custom_autoencoder.1} parent=1 // pred_region
      %s18 = ssub.s32 2048, 2048
      %19 = vsyncadd [#allocation3], %s18
      %s20 = sshll.u32 [#allocation2], 4
      %s21 = int_to_ptr.vmem [resolvable:$true] %s20
      %26 = dma.hbm_to_vmem [thread:$0]  %s1, 2048, %s21, [#allocation3], 128, 128, 8
    $region9: #{custom_autoencoder.1} parent=1 // pred_fallthru
      _
    // Predicated region
    $region10: #{custom_autoencoder.1} parent=1 // pred_check
      _
    $region11: #{custom_autoencoder.1} parent=1 // pred_check_branch
      %28 = sbr.rel (0) target = $region13
    $region12: #{custom_autoencoder.1} parent=1 // pred_region
      _
    $region13: #{custom_autoencoder.1} parent=1 // pred_fallthru
      _
    // Predicated region
    $region14: #{custom_autoencoder.1} parent=1 // pred_check
      _
    $region15: #{custom_autoencoder.1} parent=1 // pred_check_branch
      %30 = sbr.rel (0) target = $region17
    $region16: #{custom_autoencoder.1} parent=1 // pred_region
      %s32 = ssub.s32 2048, 2048
      %33 = vsyncadd [#allocation6], %s32
      %s34 = sshll.u32 [#allocation5], 4
      %s35 = int_to_ptr.vmem [resolvable:$true] %s34
      %40 = dma.hbm_to_vmem [thread:$0]  %s3, 2048, %s35, [#allocation6], 128, 128, 8
    $region17: #{custom_autoencoder.1} parent=1 // pred_fallthru
      _
    // Predicated region
    $region18: #{custom_autoencoder.1} parent=1 // pred_check
      _
    $region19: #{custom_autoencoder.1} parent=1 // pred_check_branch
      %42 = sbr.rel (0) target = $region21
    $region20: #{custom_autoencoder.1} parent=1 // pred_region
      _
    $region21: #{custom_autoencoder.1} parent=1 // pred_fallthru
      _
    // Predicated region
    $region22: #{custom_autoencoder.1} parent=1 // pred_check
      _
    $region23: #{custom_autoencoder.1} parent=1 // pred_check_branch
      %44 = sbr.rel (0) target = $region25
    $region24: #{custom_autoencoder.1} parent=1 // pred_region
      %45 = dma.done [#allocation3], 2048
    $region25: #{custom_autoencoder.1} parent=1 // pred_fallthru
      _
    // Predicated region
    $region26: #{custom_autoencoder.1} parent=1 // pred_check
      _
    $region27: #{custom_autoencoder.1} parent=1 // pred_check_branch
      %47 = sbr.rel (0) target = $region29
    $region28: #{custom_autoencoder.1} parent=1 // pred_region
      %48 = dma.done [#allocation6], 2048
    $region29: #{custom_autoencoder.1} parent=1 // pred_fallthru
      _
    %v49 = vld [vmem:[%s0] sm:$0xff]
    %v50 = vld [vmem:[#allocation2] sm:$0xff]
    %v51 = vld [vmem:[#allocation2 + $0x8] sm:$0xff]
    %v52 = vld [vmem:[#allocation2 + $0x10] sm:$0xff]
    %v53 = vld [vmem:[#allocation2 + $0x18] sm:$0xff]
    %v54 = vld [vmem:[#allocation2 + $0x20] sm:$0xff]
    %v55 = vld [vmem:[#allocation2 + $0x28] sm:$0xff]
    %v56 = vld [vmem:[#allocation2 + $0x30] sm:$0xff]
    %v57 = vld [vmem:[#allocation2 + $0x38] sm:$0xff]
    %v58 = vld [vmem:[#allocation2 + $0x40] sm:$0xff]
    %v59 = vld [vmem:[#allocation2 + $0x48] sm:$0xff]
    %v60 = vld [vmem:[#allocation2 + $0x50] sm:$0xff]
    %v61 = vld [vmem:[#allocation2 + $0x58] sm:$0xff]
    %v62 = vld [vmem:[#allocation2 + $0x60] sm:$0xff]
    %v63 = vld [vmem:[#allocation2 + $0x68] sm:$0xff]
    %v64 = vld [vmem:[#allocation2 + $0x70] sm:$0xff]
    %v65 = vld [vmem:[#allocation2 + $0x78] sm:$0xff]
    %v66 = vld [vmem:[%s2] sm:$0x1]
    %v68 = vlaneseq
    %v69 = vshrl.u32 %v68, 7
    %v70 = vsub.s32 0, %v69
    %v71 = vrot.slane %v66, %v70
    %73 = vmatprep.subr.mxu0 0.0
    %74 = vmatpush1.msra.mxu0 %v50
    %75 = vmatprep.subr.mxu0 0.0
    %76 = vmatpush1.msra.mxu0 %v51
    %77 = vmatprep.subr.mxu0 0.0
    %78 = vmatpush1.msra.mxu0 %v52
    %79 = vmatprep.subr.mxu0 0.0
    %80 = vmatpush1.msra.mxu0 %v53
    %81 = vmatprep.subr.mxu0 0.0
    %82 = vmatpush1.msra.mxu0 %v54
    %83 = vmatprep.subr.mxu0 0.0
    %84 = vmatpush1.msra.mxu0 %v55
    %85 = vmatprep.subr.mxu0 0.0
    %86 = vmatpush1.msra.mxu0 %v56
    %87 = vmatprep.subr.mxu0 0.0
    %88 = vmatpush1.msra.mxu0 %v57
    %89 = vmatprep.subr.mxu0 0.0
    %90 = vmatpush1.msra.mxu0 %v58
    %91 = vmatprep.subr.mxu0 0.0
    %92 = vmatpush1.msra.mxu0 %v59
    %93 = vmatprep.subr.mxu0 0.0
    %94 = vmatpush1.msra.mxu0 %v60
    %95 = vmatprep.subr.mxu0 0.0
    %96 = vmatpush1.msra.mxu0 %v61
    %97 = vmatprep.subr.mxu0 0.0
    %98 = vmatpush1.msra.mxu0 %v62
    %99 = vmatprep.subr.mxu0 0.0
    %100 = vmatpush1.msra.mxu0 %v63
    %101 = vmatprep.subr.mxu0 0.0
    %102 = vmatpush1.msra.mxu0 %v64
    %103 = vmatprep.subr.mxu0 0.0
    %104 = vmatpush1.msra.mxu0 %v65
    %105 = vmatprep.subr.mxu0 0.0
    %106 = vmatpush1.msra.mxu0 0.0
    %107 = vmatprep.subr.mxu0 0.0
    %108 = vmatpush1.msra.mxu0 0.0
    %109 = vmatprep.subr.mxu0 0.0
    %110 = vmatpush1.msra.mxu0 0.0
    %111 = vmatprep.subr.mxu0 0.0
    %112 = vmatpush1.msra.mxu0 0.0
    %113 = vmatprep.subr.mxu0 0.0
    %114 = vmatpush1.msra.mxu0 0.0
    %115 = vmatprep.subr.mxu0 0.0
    %116 = vmatpush1.msra.mxu0 0.0
    %117 = vmatprep.subr.mxu0 0.0
    %118 = vmatpush1.msra.mxu0 0.0
    %119 = vmatprep.subr.mxu0 0.0
    %120 = vmatpush1.msra.mxu0 0.0
    %121 = vmatprep.subr.mxu0 0.0
    %122 = vmatpush1.msra.mxu0 0.0
    %123 = vmatprep.subr.mxu0 0.0
    %124 = vmatpush1.msra.mxu0 0.0
    %125 = vmatprep.subr.mxu0 0.0
    %126 = vmatpush1.msra.mxu0 0.0
    %127 = vmatprep.subr.mxu0 0.0
    %128 = vmatpush1.msra.mxu0 0.0
    %129 = vmatprep.subr.mxu0 0.0
    %130 = vmatpush1.msra.mxu0 0.0
    %131 = vmatprep.subr.mxu0 0.0
    %132 = vmatpush1.msra.mxu0 0.0
    %133 = vmatprep.subr.mxu0 0.0
    %134 = vmatpush1.msra.mxu0 0.0
    %135 = vmatprep.subr.mxu0 0.0
    %136 = vmatpush1.msra.mxu0 0.0
    %137 = vmatprep.mubr.f32.mxu0 0.0
    %138 = vmatmul.mubr.f32.gmra.mrb[0].mxu0 %v49
    %v139 = vpop.f32.mrb[0].mxu0
    %v140 = vadd.f32 %v71, %v139
    %v141 = vpop.f32.mrb[0].mxu0
    %142 = vdwg.mxu0
    %v143 = vtanh.pop %v140
    %v144 = vld [vmem:[#allocation5] sm:$0xff]
    %v145 = vld [vmem:[#allocation5 + $0x8] sm:$0xff]
    %v146 = vld [vmem:[#allocation5 + $0x10] sm:$0xff]
    %v147 = vld [vmem:[#allocation5 + $0x18] sm:$0xff]
    %v148 = vld [vmem:[#allocation5 + $0x20] sm:$0xff]
    %v149 = vld [vmem:[#allocation5 + $0x28] sm:$0xff]
    %v150 = vld [vmem:[#allocation5 + $0x30] sm:$0xff]
    %v151 = vld [vmem:[#allocation5 + $0x38] sm:$0xff]
    %v152 = vld [vmem:[#allocation5 + $0x40] sm:$0xff]
    %v153 = vld [vmem:[#allocation5 + $0x48] sm:$0xff]
    %v154 = vld [vmem:[#allocation5 + $0x50] sm:$0xff]
    %v155 = vld [vmem:[#allocation5 + $0x58] sm:$0xff]
    %v156 = vld [vmem:[#allocation5 + $0x60] sm:$0xff]
    %v157 = vld [vmem:[#allocation5 + $0x68] sm:$0xff]
    %v158 = vld [vmem:[#allocation5 + $0x70] sm:$0xff]
    %v159 = vld [vmem:[#allocation5 + $0x78] sm:$0xff]
    %v160 = vld [vmem:[%s4] sm:$0x1]
    %v162 = vlaneseq
    %v163 = vshrl.u32 %v162, 7
    %v164 = vsub.s32 0, %v163
    %v165 = vrot.slane %v160, %v164
    %167 = vmatprep.subr.mxu0 0.0
    %168 = vmatpush1.msra.mxu0 %v144
    %169 = vmatprep.subr.mxu0 0.0
    %170 = vmatpush1.msra.mxu0 %v145
    %171 = vmatprep.subr.mxu0 0.0
    %172 = vmatpush1.msra.mxu0 %v146
    %173 = vmatprep.subr.mxu0 0.0
    %174 = vmatpush1.msra.mxu0 %v147
    %175 = vmatprep.subr.mxu0 0.0
    %176 = vmatpush1.msra.mxu0 %v148
    %177 = vmatprep.subr.mxu0 0.0
    %178 = vmatpush1.msra.mxu0 %v149
    %179 = vmatprep.subr.mxu0 0.0
    %180 = vmatpush1.msra.mxu0 %v150
    %181 = vmatprep.subr.mxu0 0.0
    %182 = vmatpush1.msra.mxu0 %v151
    %183 = vmatprep.subr.mxu0 0.0
    %184 = vmatpush1.msra.mxu0 %v152
    %185 = vmatprep.subr.mxu0 0.0
    %186 = vmatpush1.msra.mxu0 %v153
    %187 = vmatprep.subr.mxu0 0.0
    %188 = vmatpush1.msra.mxu0 %v154
    %189 = vmatprep.subr.mxu0 0.0
    %190 = vmatpush1.msra.mxu0 %v155
    %191 = vmatprep.subr.mxu0 0.0
    %192 = vmatpush1.msra.mxu0 %v156
    %193 = vmatprep.subr.mxu0 0.0
    %194 = vmatpush1.msra.mxu0 %v157
    %195 = vmatprep.subr.mxu0 0.0
    %196 = vmatpush1.msra.mxu0 %v158
    %197 = vmatprep.subr.mxu0 0.0
    %198 = vmatpush1.msra.mxu0 %v159
    %199 = vmatprep.subr.mxu0 0.0
    %200 = vmatpush1.msra.mxu0 0.0
    %201 = vmatprep.subr.mxu0 0.0
    %202 = vmatpush1.msra.mxu0 0.0
    %203 = vmatprep.subr.mxu0 0.0
    %204 = vmatpush1.msra.mxu0 0.0
    %205 = vmatprep.subr.mxu0 0.0
    %206 = vmatpush1.msra.mxu0 0.0
    %207 = vmatprep.subr.mxu0 0.0
    %208 = vmatpush1.msra.mxu0 0.0
    %209 = vmatprep.subr.mxu0 0.0
    %210 = vmatpush1.msra.mxu0 0.0
    %211 = vmatprep.subr.mxu0 0.0
    %212 = vmatpush1.msra.mxu0 0.0
    %213 = vmatprep.subr.mxu0 0.0
    %214 = vmatpush1.msra.mxu0 0.0
    %215 = vmatprep.subr.mxu0 0.0
    %216 = vmatpush1.msra.mxu0 0.0
    %217 = vmatprep.subr.mxu0 0.0
    %218 = vmatpush1.msra.mxu0 0.0
    %219 = vmatprep.subr.mxu0 0.0
    %220 = vmatpush1.msra.mxu0 0.0
    %221 = vmatprep.subr.mxu0 0.0
    %222 = vmatpush1.msra.mxu0 0.0
    %223 = vmatprep.subr.mxu0 0.0
    %224 = vmatpush1.msra.mxu0 0.0
    %225 = vmatprep.subr.mxu0 0.0
    %226 = vmatpush1.msra.mxu0 0.0
    %227 = vmatprep.subr.mxu0 0.0
    %228 = vmatpush1.msra.mxu0 0.0
    %229 = vmatprep.subr.mxu0 0.0
    %230 = vmatpush1.msra.mxu0 0.0
    %231 = vmatprep.mubr.f32.mxu0 0.0
    %232 = vmatmul.mubr.f32.gmra.mrb[0].mxu0 %v143
    %v233 = vpop.f32.mrb[0].mxu0
    %v234 = vadd.f32 %v165, %v233
    %v235 = vpop.f32.mrb[0].mxu0
    %236 = vdwg.mxu0
    %v237 = vmul.f32 %v234, 0.5
    %v238 = vtanh.pop %v237
    %v239 = vmul.f32 %v238, 0.5
    %v240 = vadd.f32 %v239, 0.5
    %241 = vst [vmem:[#allocation7] sm:$0xff] %v240
    // Predicated region
    $region30: #{custom_autoencoder.1} parent=1 // pred_check
      _
    $region31: #{custom_autoencoder.1} parent=1 // pred_check_branch
      %243 = sbr.rel (0) target = $region33
    $region32: #{custom_autoencoder.1} parent=1 // pred_region
      %s245 = ssub.s32 128, 128
      %246 = vsyncadd [#allocation4], %s245
      %s248 = sshll.u32 [#allocation7], 4
      %s249 = int_to_ptr.vmem [resolvable:$true] %s248
      %251 = dma.vmem_to_hbm [thread:$0]  %s249, 128, %s5, [#allocation4]
    $region33: #{custom_autoencoder.1} parent=1 // pred_fallthru
      _
    // Predicated region
    $region34: #{custom_autoencoder.1} parent=1 // pred_check
      _
    $region35: #{custom_autoencoder.1} parent=1 // pred_check_branch
      %253 = sbr.rel (0) target = $region37
    $region36: #{custom_autoencoder.1} parent=1 // pred_region
      %254 = dma.done [#allocation4], 128
    $region37: #{custom_autoencoder.1} parent=1 // pred_fallthru
      _
    %255 = vsyncpa [#allocation3], 1
    %256 = vsyncpa [#allocation6], 1
    %257 = vsyncpa [#allocation4], 1

</llo_original>
